<compile_context>
chip_gen: v7x
topology: tpu7x:2x2x1
jax: 0.10.0
libtpu: 0.0.40
codegen_flags: <defaults>
</compile_context>

<pallas_src>
import jax
import jax.numpy as jnp
from jax import lax
from jax.experimental import pallas as pl
from jax.experimental.pallas import tpu as pltpu


def _attn_kernel(ht_ref, enc_ref, w_ref, out_ref):
    """Fused Linear projection + batched score matmul + exact softmax.

    ht_ref:  (TB, L, D)  target hidden (bug-compatible raw reshape of (L, B, D))
    enc_ref: (TB, S, D)  encoder states, batch-major
    w_ref:   (D, D)      nn.Linear(D, D, bias=False).weight  (y = x @ W.T)
    out_ref: (TB, L, S)  softmax attention weights
    """
    tb, L, D = ht_ref.shape
    S = enc_ref.shape[1]

    ht = ht_ref[...]
    enc = enc_ref[...]
    w = w_ref[...]

    # Projection: one (TB*L, D) @ W^T matmul.  Contract the last dim of both
    # operands (MXU consumes A @ B^T natively; no weight transpose materialized).
    # Only leading-dim reshapes are used (layout-preserving on TPU).
    proj = lax.dot_general(
        ht.reshape(tb * L, D), w,
        dimension_numbers=(((1,), (1,)), ((), ())),
        preferred_element_type=jnp.float32,
    ).reshape(tb, L, D)

    # Scores: batched A @ B^T ('bld,bsd->bls'); contract the shared feature dim
    # directly -- no (S, D) -> (D, S) transpose per grid step.
    if proj.dtype != enc.dtype:
        # bf16 compute path only: feed the MXU matching operand dtypes
        # (accumulation below is still f32 via preferred_element_type).
        proj = proj.astype(enc.dtype)
    scores = lax.dot_general(
        proj, enc,
        dimension_numbers=(((2,), (2,)), ((0,), (0,))),
        preferred_element_type=jnp.float32,
    )  # (TB, L, S) float32

    # Exact softmax over source positions in f32 (matches F.softmax; rows sum to 1).
    m = jnp.max(scores, axis=-1, keepdims=True)
    e = jnp.exp(scores - m)
    denom = jnp.sum(e, axis=-1, keepdims=True)
    out_ref[...] = (e / denom).astype(out_ref.dtype)


def _pick_batch_block(B, L, S, D, *, elt_bytes=4, out_elt_bytes=4,
                      vmem_budget_bytes=48 << 20, target_steps=2):
    """Size the batch block from the VMEM budget instead of a fixed constant.

    Each batch element needs roughly 2x (double-buffered) input + output blocks;
    half the budget is kept as headroom for the f32 compute temporaries
    (proj / scores / exp) and compiler-internal scratch.
    """
    per_b = 2 * (elt_bytes * (L * D + S * D) + out_elt_bytes * L * S)
    fixed = 2 * elt_bytes * D * D            # weight block (double-buffered)
    headroom = vmem_budget_bytes // 2
    cap = max(1, (headroom - fixed) // max(per_b, 1))
    tb = max(1, min(B, cap))
    # For large batches keep (at least) 2 balanced "parallel" steps so v7x's two
    # TensorCores both get work; small batches run as one giant block (the grid
    # is just a serial loop on v5e/v6e, so extra steps are pure overhead there).
    if B > 8 and B >= 2 * target_steps:
        tb = min(tb, pl.cdiv(B, target_steps))
    return tb


def attn_general_forward(hidden, encoder_outputs, weight, *, compute_dtype=None):
    """Pallas equivalent of Attn('general', hidden_size).forward.

    hidden:          (tgt_len, tgt_batch, D)
    encoder_outputs: (src_len, src_batch, D)
    weight:          (D, D) -- nn.Linear(D, D, bias=False).weight
    returns:         (batch, tgt_len, src_len) softmax attention weights
    """
    L, B, D = hidden.shape
    S, Bs, Ds = encoder_outputs.shape
    assert D == Ds == weight.shape[0] == weight.shape[1]
    assert B == Bs

    out_dtype = hidden.dtype

    # Replicate PyTorch's exact view semantics (raw row-major reshape, NOT a
    # transpose) -- free in XLA, no data movement.
    h_t = hidden.reshape(B, L, D)

    # Batch-major encoder so the in-kernel score matmul is a plain batched A @ B^T.
    # TODO(synk): take (B, S, D) directly from the caller to avoid this HBM pass.
    enc = jnp.transpose(encoder_outputs, (1, 0, 2))  # (B, S, D)

    if compute_dtype is not None:
        # Cast in the wrapper (halves DMA bytes; no in-kernel VPU casts).
        h_t = h_t.astype(compute_dtype)
        enc = enc.astype(compute_dtype)
        weight = weight.astype(compute_dtype)

    elt = jnp.dtype(h_t.dtype).itemsize
    out_elt = jnp.dtype(out_dtype).itemsize

    tb = _pick_batch_block(B, L, S, D, elt_bytes=elt, out_elt_bytes=out_elt)
    grid = (pl.cdiv(B, tb),)   # partial last block allowed

    # Explicit VMEM budget: double-buffered input/output blocks + weight + rough
    # f32 compute temporaries, clamped to 48 MiB (headroom on v7x's 64 MiB/TC).
    block_bytes = (elt * tb * (L * D + S * D)      # hidden + encoder blocks
                   + elt * D * D                   # weight block
                   + out_elt * tb * L * S)         # output block
    temps_bytes = 4 * tb * (L * D + 2 * L * S)     # proj + scores + exp (f32)
    vmem_needed = 2 * block_bytes + temps_bytes
    vmem_limit = int(min(max(2 * vmem_needed, 16 << 20), 48 << 20))

    cost = pl.CostEstimate(
        flops=int(2 * B * L * D * D + 2 * B * L * S * D),
        transcendentals=int(B * L * S),
        bytes_accessed=int(elt * (B * L * D + B * S * D + D * D)
                           + out_elt * B * L * S),
    )

    grid_spec = pltpu.PrefetchScalarGridSpec(
        num_scalar_prefetch=0,
        grid=grid,
        in_specs=[
            pl.BlockSpec((tb, L, D), lambda b: (b, 0, 0)),
            pl.BlockSpec((tb, S, D), lambda b: (b, 0, 0)),
            # Grid-invariant weight block (index_map always (0,0)); Pallas skips
            # the re-DMA when the block index does not change.
            pl.BlockSpec((D, D), lambda b: (0, 0)),
        ],
        out_specs=pl.BlockSpec((tb, L, S), lambda b: (b, 0, 0)),
    )

    return pl.pallas_call(
        _attn_kernel,
        out_shape=jax.ShapeDtypeStruct((B, L, S), out_dtype),
        grid_spec=grid_spec,
        compiler_params=pltpu.CompilerParams(
            dimension_semantics=("parallel",),
            vmem_limit_bytes=vmem_limit,
        ),
        cost_estimate=cost,
    )(h_t, enc, weight)


def _reference(hidden, encoder_outputs, weight):
    """Pure-JAX reference mirroring the PyTorch code line by line."""
    tgt_len, tgt_batch, tgt_dim = hidden.shape
    h_t_ = hidden.reshape(tgt_batch * tgt_len, tgt_dim)
    h_t_ = h_t_ @ weight.T
    h_t = h_t_.reshape(tgt_batch, tgt_len, tgt_dim)
    h_s_ = jnp.transpose(encoder_outputs, (1, 0, 2))  # (B, S, D)
    h_s_ = jnp.transpose(h_s_, (0, 2, 1))             # (B, D, S)
    align = jnp.einsum("bld,bds->bls", h_t, h_s_)
    batch, targetL, sourceL = align.shape
    av = jax.nn.softmax(align.reshape(batch * targetL, sourceL), axis=1)
    return av.reshape(batch, targetL, sourceL)


if __name__ == "__main__":
    hidden_size = 32
    tgt_len, src_len, batch = 8, 16, 2

    key = jax.random.PRNGKey(0)
    k1, k2, k3 = jax.random.split(key, 3)

    hidden = jax.random.normal(k1, (tgt_len, batch, hidden_size), dtype=jnp.float32)
    encoder_outputs = jax.random.normal(k2, (src_len, batch, hidden_size), dtype=jnp.float32)
    # nn.Linear(hidden, hidden, bias=False) weight: uniform(-1/sqrt(D), 1/sqrt(D))
    bound = 1.0 / (hidden_size ** 0.5)
    weight = jax.random.uniform(
        k3, (hidden_size, hidden_size), minval=-bound, maxval=bound, dtype=jnp.float32
    )

    out = attn_general_forward(hidden, encoder_outputs, weight)
    out = jax.block_until_ready(out)

    ref = _reference(hidden, encoder_outputs, weight)
    assert out.shape == (batch, tgt_len, src_len)
    assert jnp.allclose(out, ref, atol=2e-3, rtol=2e-3), "mismatch vs reference"
    # Exact softmax (no approx reciprocal): rows sum to 1 within f32 rounding.
    assert jnp.allclose(jnp.sum(out, axis=-1), 1.0, atol=1e-4), "rows not normalized"

    print("KERNEL_OK")
</pallas_src>

<mosaic_0001>
module attributes {stable_mosaic.version = 11 : i64} {
  func.func @_attn_kernel(%arg0: i32, %arg1: memref<2x8x32xf32, #tpu.memory_space<vmem>>, %arg2: memref<2x16x32xf32, #tpu.memory_space<vmem>>, %arg3: memref<32x32xf32, #tpu.memory_space<vmem>>, %arg4: memref<2x8x16xf32, #tpu.memory_space<vmem>>) attributes {dimension_semantics = [#tpu.dimension_semantics<parallel>], iteration_bounds = array<i64: 1>, scalar_prefetch = 0 : i64, scratch_operands = 0 : i64, tpu.core_type = #tpu.core_type<tc>, window_params = [{transform_indices = @transform_0, window_bounds = array<i64: 2, 8, 32>}, {transform_indices = @transform_1, window_bounds = array<i64: 2, 16, 32>}, {pipeline_mode = #tpu.pipeline_mode<synchronous>, transform_indices = @transform_2, window_bounds = array<i64: 32, 32>}, {transform_indices = @transform_3, window_bounds = array<i64: 2, 8, 16>}]} {
    %c0 = arith.constant 0 : index
    %c0_0 = arith.constant 0 : index
    %c0_1 = arith.constant 0 : index
    %0 = vector.load %arg1[%c0, %c0_0, %c0_1] : memref<2x8x32xf32, #tpu.memory_space<vmem>>, vector<2x8x32xf32>
    %c0_2 = arith.constant 0 : index
    %c0_3 = arith.constant 0 : index
    %c0_4 = arith.constant 0 : index
    %1 = vector.load %arg2[%c0_2, %c0_3, %c0_4] : memref<2x16x32xf32, #tpu.memory_space<vmem>>, vector<2x16x32xf32>
    %c0_5 = arith.constant 0 : index
    %c0_6 = arith.constant 0 : index
    %2 = vector.load %arg3[%c0_5, %c0_6] : memref<32x32xf32, #tpu.memory_space<vmem>>, vector<32x32xf32>
    %3 = vector.shape_cast %0 : vector<2x8x32xf32> to vector<16x32xf32>
    %cst = arith.constant dense<0.000000e+00> : vector<16x32xf32>
    %4 = tpu.matmul %3, %2, %cst {dimension_numbers = #tpu.dot_dimension_numbers<[1], [1], [0], [0], [0, 0, 1, 0], [], []>} : vector<16x32xf32>, vector<32x32xf32>, vector<16x32xf32> -> vector<16x32xf32>
    %5 = vector.shape_cast %4 : vector<16x32xf32> to vector<2x8x32xf32>
    %cst_7 = arith.constant dense<0.000000e+00> : vector<2x8x16xf32>
    %6 = tpu.matmul %5, %1, %cst_7 {dimension_numbers = #tpu.dot_dimension_numbers<[2], [2], [1], [1], [0, 0, 0, 1, 1, 1], [0], [0]>} : vector<2x8x32xf32>, vector<2x16x32xf32>, vector<2x8x16xf32> -> vector<2x8x16xf32>
    %cst_8 = arith.constant dense<0xFF800000> : vector<2x8xf32>
    %7 = vector.multi_reduction <maximumf>, %6, %cst_8 [2] : vector<2x8x16xf32> to vector<2x8xf32>
    %8 = vector.shape_cast %7 : vector<2x8xf32> to vector<2x8x1xf32>
    %9 = vector.broadcast %8 : vector<2x8x1xf32> to vector<2x8x16xf32>
    %10 = arith.subf %6, %9 : vector<2x8x16xf32>
    %11 = math.exp %10 : vector<2x8x16xf32>
    %cst_9 = arith.constant dense<0.000000e+00> : vector<2x8xf32>
    %12 = vector.multi_reduction <add>, %11, %cst_9 [2] : vector<2x8x16xf32> to vector<2x8xf32>
    %13 = vector.shape_cast %12 : vector<2x8xf32> to vector<2x8x1xf32>
    %14 = vector.broadcast %13 : vector<2x8x1xf32> to vector<2x8x16xf32>
    %15 = arith.divf %11, %14 : vector<2x8x16xf32>
    %c0_10 = arith.constant 0 : index
    %c0_11 = arith.constant 0 : index
    %c0_12 = arith.constant 0 : index
    %16 = vector.load %arg4[%c0_10, %c0_11, %c0_12] : memref<2x8x16xf32, #tpu.memory_space<vmem>>, vector<2x8x16xf32>
    tpu.vector_store %arg4[%c0_10, %c0_11, %c0_12], %15 {strides = array<i32>} : memref<2x8x16xf32, #tpu.memory_space<vmem>>, vector<2x8x16xf32>,
    return
  }
  func.func @transform_0(%arg0: i32) -> (i32, i32, i32) {
    %c0_i32 = arith.constant 0 : i32
    %c0_i32_0 = arith.constant 0 : i32
    %c0_i32_1 = arith.constant 0 : i32
    return %arg0, %c0_i32, %c0_i32_0 : i32, i32, i32
  }
  func.func @transform_1(%arg0: i32) -> (i32, i32, i32) {
    %c0_i32 = arith.constant 0 : i32
    %c0_i32_0 = arith.constant 0 : i32
    %c0_i32_1 = arith.constant 0 : i32
    return %arg0, %c0_i32, %c0_i32_0 : i32, i32, i32
  }
  func.func @transform_2(%arg0: i32) -> (i32, i32) {
    %c0_i32 = arith.constant 0 : i32
    %c0_i32_0 = arith.constant 0 : i32
    %c0_i32_1 = arith.constant 0 : i32
    return %c0_i32, %c0_i32_0 : i32, i32
  }
  func.func @transform_3(%arg0: i32) -> (i32, i32, i32) {
    %c0_i32 = arith.constant 0 : i32
    %c0_i32_0 = arith.constant 0 : i32
    %c0_i32_1 = arith.constant 0 : i32
    return %arg0, %c0_i32, %c0_i32_0 : i32, i32, i32
  }
}

</mosaic_0001>

<llo_original>
// kernel: tpu_custom_call.1
$region0: #{tpu_custom_call.1}
  #allocation0 [shape = 'u32[]', space=smem, size = 0x4, offset = 0x4, fixed_abs, tag = 'smem constant byte address 0x4 - core index']
  #allocation1 [shape = 'u32[144,128]{1,0:T(1,128)}', space=vmem, size = 0x12000, scoped, tag = 'internal scratch']
  %s0 = inlined_call_operand.hbm [shape: f32[2,8,32], index: 0, kind: input, shape index: {}]
  %s1 = inlined_call_operand.hbm [shape: f32[2,16,32], index: 1, kind: input, shape index: {}]
  %s2 = inlined_call_operand.hbm [shape: f32[32,32], index: 2, kind: input, shape index: {}]
  %s3 = inlined_call_operand.hbm [shape: f32[2,8,16], index: 3, kind: output, shape index: {}]
  %s4 = sld [smem:[#allocation0]]
  $region34: #{tpu_custom_call.1} parent=0
    _
  %s6 = ssub.s32 1, %s4
  %s7 = scalar_select 0, %s6, %s4
  $region1: #{tpu_custom_call.1} parent=0
    #allocation2 [shape = 'u8[8192]{0}', space=vmem, size = 0x2000, scoped, tag = 'input window, operand 0, single buffered']
    #allocation3 [shape = 's32[1]{0}', space=sflag, size = 0x4, scoped, tag = 'scoped memory for tpu_custom_call.1']
    #allocation4 [shape = 's32[1]{0}', space=sflag, size = 0x4, scoped, tag = 'scoped memory for tpu_custom_call.1']
    #allocation5 [shape = 'u8[16384]{0}', space=vmem, size = 0x4000, scoped, tag = 'input window, operand 1, single buffered']
    #allocation6 [shape = 's32[1]{0}', space=sflag, size = 0x4, scoped, tag = 'scoped memory for tpu_custom_call.1']
    #allocation7 [shape = 'u8[16384]{0}', space=vmem, size = 0x4000, scoped, tag = 'input window, operand 2, single buffered']
    #allocation8 [shape = 'u8[8192]{0}', space=vmem, size = 0x2000, scoped, tag = 'output window, operand 0, single buffered']
    %8 = vsyncpa [#allocation3], 0
    %9 = vsyncpa [#allocation6], 0
    %10 = vsyncpa [#allocation4], 0
    // Predicated region
    $region2: #{tpu_custom_call.1} parent=1 // pred_check
      _
    $region3: #{tpu_custom_call.1} parent=1 // pred_check_branch
      %12 = sbr.rel (0) target = $region5
    $region4: #{tpu_custom_call.1} parent=1 // pred_region
      %s14 = ssub.s32 256, 256
      %15 = vsyncadd [#allocation3], %s14
      %s16 = sshll.u32 [#allocation2], 4
      %s17 = int_to_ptr.vmem [resolvable:$true] %s16
      %22 = dma.hbm_to_vmem [thread:$0]  %s0, 256, %s17, [#allocation3], 128, 128, 8
    $region5: #{tpu_custom_call.1} parent=1 // pred_fallthru
      _
    // Predicated region
    $region6: #{tpu_custom_call.1} parent=1 // pred_check
      _
    $region7: #{tpu_custom_call.1} parent=1 // pred_check_branch
      %24 = sbr.rel (0) target = $region9
    $region8: #{tpu_custom_call.1} parent=1 // pred_region
      %s26 = ssub.s32 512, 512
      %27 = vsyncadd [#allocation6], %s26
      %s28 = sshll.u32 [#allocation5], 4
      %s29 = int_to_ptr.vmem [resolvable:$true] %s28
      %34 = dma.hbm_to_vmem [thread:$0]  %s1, 512, %s29, [#allocation6], 128, 128, 8
    $region9: #{tpu_custom_call.1} parent=1 // pred_fallthru
      _
    // Predicated region
    $region10: #{tpu_custom_call.1} parent=1 // pred_check
      _
    $region11: #{tpu_custom_call.1} parent=1 // pred_check_branch
      %36 = sbr.rel (0) target = $region13
    $region12: #{tpu_custom_call.1} parent=1 // pred_region
      %s38 = ssub.s32 512, 512
      %39 = vsyncadd [#allocation6], %s38
      %s40 = sshll.u32 [#allocation7], 4
      %s41 = int_to_ptr.vmem [resolvable:$true] %s40
      %46 = dma.hbm_to_vmem [thread:$0]  %s2, 512, %s41, [#allocation6], 128, 128, 8
    $region13: #{tpu_custom_call.1} parent=1 // pred_fallthru
      _
    // Predicated region
    $region14: #{tpu_custom_call.1} parent=1 // pred_check
      _
    $region15: #{tpu_custom_call.1} parent=1 // pred_check_branch
      %48 = sbr.rel (0) target = $region17
    $region16: #{tpu_custom_call.1} parent=1 // pred_region
      %49 = dma.done [#allocation3], 256
    $region17: #{tpu_custom_call.1} parent=1 // pred_fallthru
      _
    // Predicated region
    $region18: #{tpu_custom_call.1} parent=1 // pred_check
      _
    $region19: #{tpu_custom_call.1} parent=1 // pred_check_branch
      %51 = sbr.rel (0) target = $region21
    $region20: #{tpu_custom_call.1} parent=1 // pred_region
      %52 = dma.done [#allocation6], 512
    $region21: #{tpu_custom_call.1} parent=1 // pred_fallthru
      _
    // Predicated region
    $region22: #{tpu_custom_call.1} parent=1 // pred_check
      _
    $region23: #{tpu_custom_call.1} parent=1 // pred_check_branch
      %54 = sbr.rel (0) target = $region25
    $region24: #{tpu_custom_call.1} parent=1 // pred_region
      %55 = dma.done [#allocation6], 512
    $region25: #{tpu_custom_call.1} parent=1 // pred_fallthru
      _
    %v56 = vld [vmem:[#allocation2] sm:$0xff]
    %v57 = vld [vmem:[#allocation2 + $0x8] sm:$0xff]
    %v58 = vld [vmem:[#allocation5] sm:$0xff]
    %v59 = vld [vmem:[#allocation5 + $0x8] sm:$0xff]
    %v60 = vld [vmem:[#allocation5 + $0x10] sm:$0xff]
    %v61 = vld [vmem:[#allocation5 + $0x18] sm:$0xff]
    %v62 = vld [vmem:[#allocation7] sm:$0xff]
    %v63 = vld [vmem:[#allocation7 + $0x8] sm:$0xff]
    %v64 = vld [vmem:[#allocation7 + $0x10] sm:$0xff]
    %v65 = vld [vmem:[#allocation7 + $0x18] sm:$0xff]
    %vm66 = vcmask 261120
    %v68 = vsel %vm66, %v56, 0
    %v71 = vsel %vm66, %v57, 0
    %v74 = vsel %vm66, %v62, 0
    %v77 = vsel %vm66, %v63, 0
    %v80 = vsel %vm66, %v64, 0
    %v83 = vsel %vm66, %v65, 0
    %85 = vmatprep.subr.mxu0 0.0
    %86 = vmatpush1.xpose.msra.mxu0 %v74
    %87 = vmatprep.subr.mxu0 0.0
    %88 = vmatpush1.xpose.msra.mxu0 %v77
    %89 = vmatprep.subr.mxu0 0.0
    %90 = vmatpush1.xpose.msra.mxu0 %v80
    %91 = vmatprep.subr.mxu0 0.0
    %92 = vmatpush1.xpose.msra.mxu0 %v83
    %93 = vmatprep.subr.mxu0 0.0
    %94 = vmatpush1.xpose.msra.mxu0 0.0
    %95 = vmatprep.subr.mxu0 0.0
    %96 = vmatpush1.xpose.msra.mxu0 0.0
    %97 = vmatprep.subr.mxu0 0.0
    %98 = vmatpush1.xpose.msra.mxu0 0.0
    %99 = vmatprep.subr.mxu0 0.0
    %100 = vmatpush1.xpose.msra.mxu0 0.0
    %101 = vmatprep.subr.mxu0 0.0
    %102 = vmatpush1.xpose.msra.mxu0 0.0
    %103 = vmatprep.subr.mxu0 0.0
    %104 = vmatpush1.xpose.msra.mxu0 0.0
    %105 = vmatprep.subr.mxu0 0.0
    %106 = vmatpush1.xpose.msra.mxu0 0.0
    %107 = vmatprep.subr.mxu0 0.0
    %108 = vmatpush1.xpose.msra.mxu0 0.0
    %109 = vmatprep.subr.mxu0 0.0
    %110 = vmatpush1.xpose.msra.mxu0 0.0
    %111 = vmatprep.subr.mxu0 0.0
    %112 = vmatpush1.xpose.msra.mxu0 0.0
    %113 = vmatprep.subr.mxu0 0.0
    %114 = vmatpush1.xpose.msra.mxu0 0.0
    %115 = vmatprep.subr.mxu0 0.0
    %116 = vmatpush1.xpose.msra.mxu0 0.0
    %117 = vmatprep.subr.mxu0 0.0
    %118 = vmatpush1.xpose.msra.mxu0 0.0
    %119 = vmatprep.subr.mxu0 0.0
    %120 = vmatpush1.xpose.msra.mxu0 0.0
    %121 = vmatprep.subr.mxu0 0.0
    %122 = vmatpush1.xpose.msra.mxu0 0.0
    %123 = vmatprep.subr.mxu0 0.0
    %124 = vmatpush1.xpose.msra.mxu0 0.0
    %125 = vmatprep.subr.mxu0 0.0
    %126 = vmatpush1.xpose.msra.mxu0 0.0
    %127 = vmatprep.subr.mxu0 0.0
    %128 = vmatpush1.xpose.msra.mxu0 0.0
    %129 = vmatprep.subr.mxu0 0.0
    %130 = vmatpush1.xpose.msra.mxu0 0.0
    %131 = vmatprep.subr.mxu0 0.0
    %132 = vmatpush1.xpose.msra.mxu0 0.0
    %133 = vmatprep.subr.mxu0 0.0
    %134 = vmatpush1.xpose.msra.mxu0 0.0
    %135 = vmatprep.subr.mxu0 0.0
    %136 = vmatpush1.xpose.msra.mxu0 0.0
    %137 = vmatprep.subr.mxu0 0.0
    %138 = vmatpush1.xpose.msra.mxu0 0.0
    %139 = vmatprep.subr.mxu0 0.0
    %140 = vmatpush1.xpose.msra.mxu0 0.0
    %141 = vmatprep.subr.mxu0 0.0
    %142 = vmatpush1.xpose.msra.mxu0 0.0
    %143 = vmatprep.subr.mxu0 0.0
    %144 = vmatpush1.xpose.msra.mxu0 0.0
    %145 = vmatprep.subr.mxu0 0.0
    %146 = vmatpush1.xpose.msra.mxu0 0.0
    %147 = vmatprep.subr.mxu0 0.0
    %148 = vmatpush1.xpose.msra.mxu0 0.0
    %149 = vmatprep.mubr.f32.mxu0 0.0
    %150 = vmatmul.mubr.f32.gmra.mrb[0].mxu0 %v68
    %v151 = vpop.f32.mrb[0].mxu0
    %v152 = vadd.f32 0.0, %v151
    %v153 = vpop.f32.mrb[0].mxu0
    %154 = vmatprep.mubr.f32.mxu0 0.0
    %155 = vmatmul.mubr.f32.gmra.mrb[0].mxu0 %v71
    %v156 = vpop.f32.mrb[0].mxu0
    %v157 = vadd.f32 0.0, %v156
    %v158 = vpop.f32.mrb[0].mxu0
    %159 = vdwg.mxu0
    %v161 = vsel %vm66, %v152, 0
    %v164 = vsel %vm66, %v58, 0
    %v167 = vsel %vm66, %v59, 0
    %169 = vmatprep.subr.mxu0 0.0
    %170 = vmatpush1.xpose.msra.mxu0 %v164
    %171 = vmatprep.subr.mxu0 0.0
    %172 = vmatpush1.xpose.msra.mxu0 %v167
    %173 = vmatprep.subr.mxu0 0.0
    %174 = vmatpush1.xpose.msra.mxu0 0.0
    %175 = vmatprep.subr.mxu0 0.0
    %176 = vmatpush1.xpose.msra.mxu0 0.0
    %177 = vmatprep.subr.mxu0 0.0
    %178 = vmatpush1.xpose.msra.mxu0 0.0
    %179 = vmatprep.subr.mxu0 0.0
    %180 = vmatpush1.xpose.msra.mxu0 0.0
    %181 = vmatprep.subr.mxu0 0.0
    %182 = vmatpush1.xpose.msra.mxu0 0.0
    %183 = vmatprep.subr.mxu0 0.0
    %184 = vmatpush1.xpose.msra.mxu0 0.0
    %185 = vmatprep.subr.mxu0 0.0
    %186 = vmatpush1.xpose.msra.mxu0 0.0
    %187 = vmatprep.subr.mxu0 0.0
    %188 = vmatpush1.xpose.msra.mxu0 0.0
    %189 = vmatprep.subr.mxu0 0.0
    %190 = vmatpush1.xpose.msra.mxu0 0.0
    %191 = vmatprep.subr.mxu0 0.0
    %192 = vmatpush1.xpose.msra.mxu0 0.0
    %193 = vmatprep.subr.mxu0 0.0
    %194 = vmatpush1.xpose.msra.mxu0 0.0
    %195 = vmatprep.subr.mxu0 0.0
    %196 = vmatpush1.xpose.msra.mxu0 0.0
    %197 = vmatprep.subr.mxu0 0.0
    %198 = vmatpush1.xpose.msra.mxu0 0.0
    %199 = vmatprep.subr.mxu0 0.0
    %200 = vmatpush1.xpose.msra.mxu0 0.0
    %201 = vmatprep.subr.mxu0 0.0
    %202 = vmatpush1.xpose.msra.mxu0 0.0
    %203 = vmatprep.subr.mxu0 0.0
    %204 = vmatpush1.xpose.msra.mxu0 0.0
    %205 = vmatprep.subr.mxu0 0.0
    %206 = vmatpush1.xpose.msra.mxu0 0.0
    %207 = vmatprep.subr.mxu0 0.0
    %208 = vmatpush1.xpose.msra.mxu0 0.0
    %209 = vmatprep.subr.mxu0 0.0
    %210 = vmatpush1.xpose.msra.mxu0 0.0
    %211 = vmatprep.subr.mxu0 0.0
    %212 = vmatpush1.xpose.msra.mxu0 0.0
    %213 = vmatprep.subr.mxu0 0.0
    %214 = vmatpush1.xpose.msra.mxu0 0.0
    %215 = vmatprep.subr.mxu0 0.0
    %216 = vmatpush1.xpose.msra.mxu0 0.0
    %217 = vmatprep.subr.mxu0 0.0
    %218 = vmatpush1.xpose.msra.mxu0 0.0
    %219 = vmatprep.subr.mxu0 0.0
    %220 = vmatpush1.xpose.msra.mxu0 0.0
    %221 = vmatprep.subr.mxu0 0.0
    %222 = vmatpush1.xpose.msra.mxu0 0.0
    %223 = vmatprep.subr.mxu0 0.0
    %224 = vmatpush1.xpose.msra.mxu0 0.0
    %225 = vmatprep.subr.mxu0 0.0
    %226 = vmatpush1.xpose.msra.mxu0 0.0
    %227 = vmatprep.subr.mxu0 0.0
    %228 = vmatpush1.xpose.msra.mxu0 0.0
    %229 = vmatprep.subr.mxu0 0.0
    %230 = vmatpush1.xpose.msra.mxu0 0.0
    %231 = vmatprep.subr.mxu0 0.0
    %232 = vmatpush1.xpose.msra.mxu0 0.0
    %233 = vmatprep.mubr.f32.mxu0 0.0
    %234 = vmatmul.mubr.f32.gmra.mrb[0].mxu0 %v161
    %v235 = vpop.f32.mrb[0].mxu0
    %v236 = vadd.f32 0.0, %v235
    %v237 = vpop.f32.mrb[0].mxu0
    %238 = vdwg.mxu0
    %v240 = vsel %vm66, %v157, 0
    %v243 = vsel %vm66, %v60, 0
    %v246 = vsel %vm66, %v61, 0
    %248 = vmatprep.subr.mxu0 0.0
    %249 = vmatpush1.xpose.msra.mxu0 %v243
    %250 = vmatprep.subr.mxu0 0.0
    %251 = vmatpush1.xpose.msra.mxu0 %v246
    %252 = vmatprep.subr.mxu0 0.0
    %253 = vmatpush1.xpose.msra.mxu0 0.0
    %254 = vmatprep.subr.mxu0 0.0
    %255 = vmatpush1.xpose.msra.mxu0 0.0
    %256 = vmatprep.subr.mxu0 0.0
    %257 = vmatpush1.xpose.msra.mxu0 0.0
    %258 = vmatprep.subr.mxu0 0.0
    %259 = vmatpush1.xpose.msra.mxu0 0.0
    %260 = vmatprep.subr.mxu0 0.0
    %261 = vmatpush1.xpose.msra.mxu0 0.0
    %262 = vmatprep.subr.mxu0 0.0
    %263 = vmatpush1.xpose.msra.mxu0 0.0
    %264 = vmatprep.subr.mxu0 0.0
    %265 = vmatpush1.xpose.msra.mxu0 0.0
    %266 = vmatprep.subr.mxu0 0.0
    %267 = vmatpush1.xpose.msra.mxu0 0.0
    %268 = vmatprep.subr.mxu0 0.0
    %269 = vmatpush1.xpose.msra.mxu0 0.0
    %270 = vmatprep.subr.mxu0 0.0
    %271 = vmatpush1.xpose.msra.mxu0 0.0
    %272 = vmatprep.subr.mxu0 0.0
    %273 = vmatpush1.xpose.msra.mxu0 0.0
    %274 = vmatprep.subr.mxu0 0.0
    %275 = vmatpush1.xpose.msra.mxu0 0.0
    %276 = vmatprep.subr.mxu0 0.0
    %277 = vmatpush1.xpose.msra.mxu0 0.0
    %278 = vmatprep.subr.mxu0 0.0
    %279 = vmatpush1.xpose.msra.mxu0 0.0
    %280 = vmatprep.subr.mxu0 0.0
    %281 = vmatpush1.xpose.msra.mxu0 0.0
    %282 = vmatprep.subr.mxu0 0.0
    %283 = vmatpush1.xpose.msra.mxu0 0.0
    %284 = vmatprep.subr.mxu0 0.0
    %285 = vmatpush1.xpose.msra.mxu0 0.0
    %286 = vmatprep.subr.mxu0 0.0
    %287 = vmatpush1.xpose.msra.mxu0 0.0
    %288 = vmatprep.subr.mxu0 0.0
    %289 = vmatpush1.xpose.msra.mxu0 0.0
    %290 = vmatprep.subr.mxu0 0.0
    %291 = vmatpush1.xpose.msra.mxu0 0.0
    %292 = vmatprep.subr.mxu0 0.0
    %293 = vmatpush1.xpose.msra.mxu0 0.0
    %294 = vmatprep.subr.mxu0 0.0
    %295 = vmatpush1.xpose.msra.mxu0 0.0
    %296 = vmatprep.subr.mxu0 0.0
    %297 = vmatpush1.xpose.msra.mxu0 0.0
    %298 = vmatprep.subr.mxu0 0.0
    %299 = vmatpush1.xpose.msra.mxu0 0.0
    %300 = vmatprep.subr.mxu0 0.0
    %301 = vmatpush1.xpose.msra.mxu0 0.0
    %302 = vmatprep.subr.mxu0 0.0
    %303 = vmatpush1.xpose.msra.mxu0 0.0
    %304 = vmatprep.subr.mxu0 0.0
    %305 = vmatpush1.xpose.msra.mxu0 0.0
    %306 = vmatprep.subr.mxu0 0.0
    %307 = vmatpush1.xpose.msra.mxu0 0.0
    %308 = vmatprep.subr.mxu0 0.0
    %309 = vmatpush1.xpose.msra.mxu0 0.0
    %310 = vmatprep.subr.mxu0 0.0
    %311 = vmatpush1.xpose.msra.mxu0 0.0
    %312 = vmatprep.mubr.f32.mxu0 0.0
    %313 = vmatmul.mubr.f32.gmra.mrb[0].mxu0 %v240
    %v314 = vpop.f32.mrb[0].mxu0
    %v315 = vadd.f32 0.0, %v314
    %v316 = vpop.f32.mrb[0].mxu0
    %317 = vdwg.mxu0
    %vm318 = vcmask 130048
    %v319 = vsel %vm318, %v236, -inf
    %320 = vmax.xlane.f32.xlu0 %v319
    %v321 = vpop.xlane.xlu0 %320
    %v322 = vsel %vm318, %v315, -inf
    %323 = vmax.xlane.f32.xlu0 %v322
    %v324 = vpop.xlane.xlu0 %323
    %v325 = vsub.f32 %v236, %v321
    %v326 = vsub.f32 %v315, %v324
    %v327 = vmul.f32 %v325, 1.442695
    %v328 = vpow.pop %v327
    %v329 = vmul.f32 %v326, 1.442695
    %v330 = vpow.pop %v329
    %v331 = vsel %vm318, %v328, 0.0
    %332 = vadd.xlane.f32.xlu0 %v331
    %v333 = vpop.xlane.xlu0 %332
    %v334 = vsel %vm318, %v330, 0.0
    %335 = vadd.xlane.f32.xlu0 %v334
    %v336 = vpop.xlane.xlu0 %335
    %v337 = vrcp.pop %v333
    %v338 = vmul.f32 %v328, %v337
    %v339 = vrcp.pop %v336
    %v340 = vmul.f32 %v330, %v339
    %341 = vst.msk [vmem:[#allocation8] sm:$0xff] %vm318, %v338
    %342 = vst.msk [vmem:[#allocation8 + $0x8] sm:$0xff] %vm318, %v340
    // Predicated region
    $region26: #{tpu_custom_call.1} parent=1 // pred_check
      _
    $region27: #{tpu_custom_call.1} parent=1 // pred_check_branch
      %344 = sbr.rel (0) target = $region29
    $region28: #{tpu_custom_call.1} parent=1 // pred_region
      %s346 = ssub.s32 256, 256
      %347 = vsyncadd [#allocation4], %s346
      %s348 = sshll.u32 [#allocation8], 4
      %s349 = int_to_ptr.vmem [resolvable:$true] %s348
      %354 = dma.vmem_to_hbm [thread:$0]  %s349, 256, %s3, [#allocation4], 128, 128, 8
    $region29: #{tpu_custom_call.1} parent=1 // pred_fallthru
      _
    // Predicated region
    $region30: #{tpu_custom_call.1} parent=1 // pred_check
      _
    $region31: #{tpu_custom_call.1} parent=1 // pred_check_branch
      %356 = sbr.rel (0) target = $region33
    $region32: #{tpu_custom_call.1} parent=1 // pred_region
      %357 = dma.done [#allocation4], 256
    $region33: #{tpu_custom_call.1} parent=1 // pred_fallthru
      _
    %358 = vsyncpa [#allocation3], 1
    %359 = vsyncpa [#allocation6], 1
    %360 = vsyncpa [#allocation4], 1

</llo_original>
